<compile_context>
chip_gen: v6e
topology: v6e:2x2x1
jax: 0.10.0
libtpu: 0.0.40
codegen_flags: <defaults>
</compile_context>

<pallas_src>
import functools

import numpy as np
import jax
import jax.numpy as jnp
from jax import lax
from jax.experimental import pallas as pl
from jax.experimental.pallas import tpu as pltpu


def _round_up(x, m):
    return ((x + m - 1) // m) * m


_VMEM_LIMIT = 48 * 1024 * 1024   # above the 16/32 MiB scoped defaults, < v7x 64 MiB
_VMEM_BUDGET = 24 * 1024 * 1024  # per-call tile budget (double-buffering included)
_LANE = 128                      # lane-dense Cout granularity
                                 # TODO(synk): bump to 256 on v6e/v7x (2x256x256 MXU)


# ----------------------------- Pallas kernels ------------------------------ #

def _matmul_small_kernel(a_ref, w_ref, b_ref, o_ref, *, post_act):
    """Resident-W path: one MXU dot per M tile, fused bias (+ optional tanh)."""
    y = jnp.dot(a_ref[...], w_ref[...], preferred_element_type=jnp.float32)
    y = y + b_ref[...]
    if post_act == "tanh":
        y = jnp.tanh(y)
    o_ref[...] = y.astype(o_ref.dtype)


def _matmul_kacc_kernel(a_ref, w_ref, b_ref, o_ref, acc_ref, *, post_act):
    """K-grid fallback for very large K*Cout: f32 VMEM accumulator over K tiles."""
    k = pl.program_id(1)

    @pl.when(k == 0)
    def _():
        acc_ref[...] = jnp.zeros_like(acc_ref)

    acc_ref[...] += jnp.dot(a_ref[...], w_ref[...],
                            preferred_element_type=jnp.float32)

    @pl.when(k == pl.num_programs(1) - 1)
    def _():
        y = acc_ref[...] + b_ref[...]
        if post_act == "tanh":
            y = jnp.tanh(y)
        o_ref[...] = y.astype(o_ref.dtype)


def _bn_stats_kernel(x_ref, sum_ref, sq_ref):
    """Pass 1: accumulate per-channel sum / sum-of-squares over M tiles (f32)."""
    @pl.when(pl.program_id(0) == 0)
    def _():
        sum_ref[...] = jnp.zeros_like(sum_ref)
        sq_ref[...] = jnp.zeros_like(sq_ref)

    x = x_ref[...].astype(jnp.float32)
    sum_ref[...] += jnp.sum(x, axis=0, keepdims=True)
    sq_ref[...] += jnp.sum(x * x, axis=0, keepdims=True)


def _bn_apply_kernel(x_ref, sum_ref, sq_ref, g_ref, b_ref, o_ref, *, inv_m, eps):
    """Pass 2: normalize one tile with the batch statistics + affine."""
    x = x_ref[...].astype(jnp.float32)
    mean = sum_ref[...] * inv_m
    var = sq_ref[...] * inv_m - mean * mean
    scale = lax.rsqrt(var + eps) * g_ref[...]
    o_ref[...] = ((x - mean) * scale + b_ref[...]).astype(o_ref.dtype)


# ----------------------------- matmul wrapper ------------------------------ #

def _tiles_fit(tm, k, cpad, out_bytes):
    a_tile = 2 * tm * k * 2          # double-buffered bf16 A tile
    w_res = 2 * k * cpad * 2         # bf16 W (counted double-buffered, conservative)
    o_tile = 2 * tm * cpad * out_bytes
    return a_tile + w_res + o_tile <= _VMEM_BUDGET


def _act_f32(x, act):
    if act is None:
        return x
    if act == "lrelu":
        return jnp.where(x > 0.0, x, 0.2 * x)
    return jnp.maximum(x, 0.0)       # "relu"


def _matmul_bias_act(A, Wm, bias, out_dtype, post_act):
    """y = post_act(A @ Wm + bias).  A (M,K) bf16, Wm (K,C) bf16, bias (C,) / None.

    Lane-dense output (C padded to a multiple of 128), M on a 'parallel' grid
    axis.  W kept resident in VMEM (constant index_map, no K grid) unless the
    tile set exceeds the VMEM budget, in which case a K grid axis with an f32
    accumulator is used.  Returns the (M, C) slice in `out_dtype`.
    """
    M, K = A.shape
    Ctrue = Wm.shape[1]
    Cpad = _round_up(Ctrue, _LANE)
    out_bytes = jnp.dtype(out_dtype).itemsize

    if Cpad != Ctrue:
        Wm = jnp.pad(Wm, ((0, 0), (0, Cpad - Ctrue)))
    if bias is None:
        brow = jnp.zeros((1, Cpad), jnp.float32)
    else:
        brow = jnp.pad(bias.astype(jnp.float32).reshape(1, Ctrue),
                       ((0, 0), (0, Cpad - Ctrue)))

    candidates = (M,) if M <= 512 else (512, 256, 128)
    TM = next((tm for tm in candidates if _tiles_fit(tm, K, Cpad, out_bytes)), None)

    if TM is not None:
        # ---- resident-W path: no K grid, no accumulator, no K padding ----
        Mpad = M if TM == M else _round_up(M, TM)
        if Mpad != M:
            A = jnp.pad(A, ((0, Mpad - M), (0, 0)))
        out = pl.pallas_call(
            functools.partial(_matmul_small_kernel, post_act=post_act),
            out_shape=jax.ShapeDtypeStruct((Mpad, Cpad), out_dtype),
            grid=(Mpad // TM,),
            in_specs=[
                pl.BlockSpec((TM, K), lambda i: (i, 0)),      # A tile (bf16)
                pl.BlockSpec((K, Cpad), lambda i: (0, 0)),    # resident W (bf16)
                pl.BlockSpec((1, Cpad), lambda i: (0, 0)),    # bias row (f32)
            ],
            out_specs=pl.BlockSpec((TM, Cpad), lambda i: (i, 0)),
            compiler_params=pltpu.CompilerParams(
                dimension_semantics=("parallel",),
                vmem_limit_bytes=_VMEM_LIMIT),
            cost_estimate=pl.CostEstimate(
                flops=2 * Mpad * K * Cpad,
                transcendentals=(Mpad * Cpad if post_act == "tanh" else 0),
                bytes_accessed=Mpad * K * 2 + K * Cpad * 2 + Mpad * Cpad * out_bytes),
        )(A, Wm, brow)
    else:
        # ---- K-grid fallback (very large K*Cout) ----
        TM, TK = 256, 512
        Mpad, Kpad = _round_up(M, TM), _round_up(K, TK)
        if (Mpad, Kpad) != (M, K):
            A = jnp.pad(A, ((0, Mpad - M), (0, Kpad - K)))
        if Kpad != K:
            Wm = jnp.pad(Wm, ((0, Kpad - K), (0, 0)))
        out = pl.pallas_call(
            functools.partial(_matmul_kacc_kernel, post_act=post_act),
            out_shape=jax.ShapeDtypeStruct((Mpad, Cpad), out_dtype),
            grid=(Mpad // TM, Kpad // TK),
            in_specs=[
                pl.BlockSpec((TM, TK), lambda i, k: (i, k)),
                pl.BlockSpec((TK, Cpad), lambda i, k: (k, 0)),
                pl.BlockSpec((1, Cpad), lambda i, k: (0, 0)),
            ],
            out_specs=pl.BlockSpec((TM, Cpad), lambda i, k: (i, 0)),
            scratch_shapes=[pltpu.VMEM((TM, Cpad), jnp.float32)],
            compiler_params=pltpu.CompilerParams(
                dimension_semantics=("parallel", "arbitrary"),
                vmem_limit_bytes=_VMEM_LIMIT),
            cost_estimate=pl.CostEstimate(
                flops=2 * Mpad * Kpad * Cpad,
                transcendentals=(Mpad * Cpad if post_act == "tanh" else 0),
                bytes_accessed=(Mpad * Kpad * 2 + (Mpad // TM) * Kpad * Cpad * 2
                                + Mpad * Cpad * out_bytes)),
        )(A, Wm, brow)

    return out[:M, :Ctrue]


# ----------------------------- layer wrappers ------------------------------ #

def conv2d_pallas(x_nhwc, w_oihw, b, *, stride, padding, act=None, post_act=None,
                  out_dtype=jnp.bfloat16):
    """Conv2d(k=4) via im2col + Pallas matmul.

    x: (N,H,W,Cin), w: (Cout,Cin,KH,KW) f32, b: (Cout,) or None.
    `act` in {None,"lrelu","relu"} is applied to the conv INPUT in f32 (wrapper;
    XLA fuses it into the im2col slab emit), matching the PyTorch ordering.
    """
    N, H, W, Cin = x_nhwc.shape
    Cout, Cin_w, KH, KW = w_oihw.shape
    assert Cin == Cin_w
    OH = (H + 2 * padding - KH) // stride + 1
    OW = (W + 2 * padding - KW) // stride + 1

    xb = _act_f32(x_nhwc.astype(jnp.float32), act).astype(jnp.bfloat16)
    xp = jnp.pad(xb, ((0, 0), (padding, padding), (padding, padding), (0, 0)))

    slabs = []
    for kh in range(KH):
        for kw in range(KW):
            slabs.append(
                xp[:, kh:kh + stride * (OH - 1) + 1:stride,
                      kw:kw + stride * (OW - 1) + 1:stride, :])
    patches = jnp.stack(slabs, axis=3)                 # (N,OH,OW,KH*KW,Cin) bf16
    K = KH * KW * Cin
    M = N * OH * OW
    A = patches.reshape(M, K)

    Wm = jnp.transpose(w_oihw, (2, 3, 1, 0)).reshape(K, Cout).astype(jnp.bfloat16)

    out = _matmul_bias_act(A, Wm, b, out_dtype, post_act)
    return out.reshape(N, OH, OW, Cout)


def conv_transpose2d_pallas(x_nhwc, w_iohw, b, *, stride=2, padding=1,
                            act=None, post_act=None, out_dtype=jnp.bfloat16):
    """ConvTranspose2d(k=4, s=2, p=1) as a 4-phase sub-pixel convolution.

    One (M', 4*Cin) x (4*Cin, 4*Cout) matmul over the UN-dilated input (2x2
    windows over a 1-px padded input), then a pixel-shuffle interleave of the
    four phases.  w: (Cin,Cout,KH,KW) PyTorch ConvTranspose layout.
    """
    Cin, Cout, KH, KW = w_iohw.shape
    assert stride == 2 and padding == 1 and KH == 4 and KW == 4
    N, H, W, C = x_nhwc.shape
    assert C == Cin

    xb = _act_f32(x_nhwc.astype(jnp.float32), act).astype(jnp.bfloat16)
    xp = jnp.pad(xb, ((0, 0), (1, 1), (1, 1), (0, 0)))         # (N, H+2, W+2, Cin)

    # patches[n,p,q,(u,v),ic] = xp[n, p+u, q+v, ic], (p,q) in [0,H+1) x [0,W+1)
    slabs = []
    for u in range(2):
        for v in range(2):
            slabs.append(xp[:, u:u + H + 1, v:v + W + 1, :])
    patches = jnp.stack(slabs, axis=3)                          # (N,H+1,W+1,4,Cin)
    Mp = N * (H + 1) * (W + 1)
    K = 4 * Cin
    A = patches.reshape(Mp, K)

    # Phase weights: out[2i+py, 2j+px] uses kernel taps kh=3-2u-py, kw=3-2v-px
    # on x rows {i-1+py+u} / cols {j-1+px+v}.  Build Wmat[(u,v,ic),(py,px,oc)].
    wf = jnp.flip(w_iohw.astype(jnp.float32), axis=(2, 3))
    wf = wf.reshape(Cin, Cout, 2, 2, 2, 2)                      # (ic,oc,u,py,v,px)
    Wm = jnp.transpose(wf, (2, 4, 0, 3, 5, 1)).reshape(K, 4 * Cout)
    Wm = Wm.astype(jnp.bfloat16)

    bias4 = None if b is None else jnp.tile(b.astype(jnp.float32), 4)

    Y = _matmul_bias_act(A, Wm, bias4, out_dtype, post_act)     # (Mp, 4*Cout)
    Y = Y.reshape(N, H + 1, W + 1, 2, 2, Cout)                  # (..., py, px, oc)

    blocks = [Y[:, py:py + H, px:px + W, py, px, :]
              for py in range(2) for px in range(2)]            # 4 x (N,H,W,Cout)
    ph = jnp.stack(blocks, axis=3).reshape(N, H, W, 2, 2, Cout)
    out = jnp.transpose(ph, (0, 1, 3, 2, 4, 5)).reshape(N, 2 * H, 2 * W, Cout)
    return out


def batchnorm2d_pallas(x_nhwc, gamma, beta, eps=1e-5, out_dtype=jnp.bfloat16):
    """Training-mode BatchNorm2d (batch stats, biased var), tiled two-pass.
    bf16 in / bf16 out, f32 statistics.  Lane dim is the native C (full-dim block)."""
    N, H, W, C = x_nhwc.shape
    M = N * H * W
    xf = x_nhwc.reshape(M, C)

    if M <= 1024:
        TMB, Mpad = M, M
    else:
        TMB = 1024
        Mpad = _round_up(M, TMB)
        xf = jnp.pad(xf, ((0, Mpad - M), (0, 0)))     # zero rows: no effect on sums
    n_tiles = Mpad // TMB

    s, sq = pl.pallas_call(
        _bn_stats_kernel,
        out_shape=(jax.ShapeDtypeStruct((1, C), jnp.float32),
                   jax.ShapeDtypeStruct((1, C), jnp.float32)),
        grid=(n_tiles,),
        in_specs=[pl.BlockSpec((TMB, C), lambda i: (i, 0))],
        out_specs=(pl.BlockSpec((1, C), lambda i: (0, 0)),
                   pl.BlockSpec((1, C), lambda i: (0, 0))),
        compiler_params=pltpu.CompilerParams(dimension_semantics=("arbitrary",)),
    )(xf)

    out = pl.pallas_call(
        functools.partial(_bn_apply_kernel, inv_m=1.0 / M, eps=eps),
        out_shape=jax.ShapeDtypeStruct((Mpad, C), out_dtype),
        grid=(n_tiles,),
        in_specs=[
            pl.BlockSpec((TMB, C), lambda i: (i, 0)),
            pl.BlockSpec((1, C), lambda i: (0, 0)),
            pl.BlockSpec((1, C), lambda i: (0, 0)),
            pl.BlockSpec((1, C), lambda i: (0, 0)),
            pl.BlockSpec((1, C), lambda i: (0, 0)),
        ],
        out_specs=pl.BlockSpec((TMB, C), lambda i: (i, 0)),
        compiler_params=pltpu.CompilerParams(dimension_semantics=("parallel",)),
    )(xf, s, sq, gamma.reshape(1, C), beta.reshape(1, C))

    return out[:M].reshape(N, H, W, C)


# ----------------------------- model assembly ------------------------------ #

def init_unet_block_params(key, outer_nc, inner_nc, input_nc=None,
                           outermost=False, innermost=False):
    """Shapes exactly as UnetSkipConnectionBlock.__init__ with norm_layer=BatchNorm2d
    (=> use_bias=False for down/up convs; outermost upconv keeps its default bias)."""
    if input_nc is None:
        input_nc = outer_nc
    kw = 4
    k1, k2, k3 = jax.random.split(key, 3)
    up_in = inner_nc if innermost else inner_nc * 2
    is_middle = (not outermost) and (not innermost)
    return {
        "mode": "outermost" if outermost else ("innermost" if innermost else "middle"),
        "down_w": jax.random.normal(k1, (inner_nc, input_nc, kw, kw), jnp.float32) * 0.02,
        "up_w": jax.random.normal(k2, (up_in, outer_nc, kw, kw), jnp.float32) * 0.02,
        "up_b": (jax.random.normal(k3, (outer_nc,), jnp.float32) * 0.02) if outermost else None,
        # PyTorch BatchNorm2d default init: gamma=1, beta=0
        "down_gamma": jnp.ones((inner_nc,), jnp.float32) if is_middle else None,
        "down_beta": jnp.zeros((inner_nc,), jnp.float32) if is_middle else None,
        "up_gamma": jnp.ones((outer_nc,), jnp.float32) if not outermost else None,
        "up_beta": jnp.zeros((outer_nc,), jnp.float32) if not outermost else None,
    }


def unet_block_pallas(x_nhwc, p):
    """Forward of UnetSkipConnectionBlock (NHWC activations, bf16 between layers)."""
    mode = p["mode"]
    if mode == "outermost":
        # [downconv] -> submodule -> [ReLU, upconv(+bias), Tanh]
        h = conv2d_pallas(x_nhwc, p["down_w"], None, stride=2, padding=1)
        h = unet_block_pallas(h, p["sub"])
        h = conv_transpose2d_pallas(h, p["up_w"], p["up_b"], act="relu",
                                    post_act="tanh", out_dtype=jnp.float32)
        return h
    if mode == "innermost":
        # [LeakyReLU, downconv] -> [ReLU, upconv, BN]; return cat([x, out])
        h = conv2d_pallas(x_nhwc, p["down_w"], None, stride=2, padding=1, act="lrelu")
        h = conv_transpose2d_pallas(h, p["up_w"], None, act="relu")
        h = batchnorm2d_pallas(h, p["up_gamma"], p["up_beta"])
        return jnp.concatenate([x_nhwc, h], axis=-1)
    # middle: [LeakyReLU, downconv, BN] -> sub -> [ReLU, upconv, BN]; cat([x, out])
    h = conv2d_pallas(x_nhwc, p["down_w"], None, stride=2, padding=1, act="lrelu")
    h = batchnorm2d_pallas(h, p["down_gamma"], p["down_beta"])
    h = unet_block_pallas(h, p["sub"])
    h = conv_transpose2d_pallas(h, p["up_w"], None, act="relu")
    h = batchnorm2d_pallas(h, p["up_gamma"], p["up_beta"])
    return jnp.concatenate([x_nhwc, h], axis=-1)


# ----------------------------- pure-JAX reference --------------------------- #

def _ref_conv(x, w, b, stride, padding):
    y = lax.conv_general_dilated(x, w, (stride, stride), [(padding, padding)] * 2,
                                 dimension_numbers=("NCHW", "OIHW", "NCHW"))
    return y if b is None else y + b[None, :, None, None]


def _ref_convT(x, w_iohw, b, stride, padding):
    k = w_iohw.shape[2]
    w = jnp.transpose(jnp.flip(w_iohw, axis=(2, 3)), (1, 0, 2, 3))
    y = lax.conv_general_dilated(x, w, (1, 1),
                                 [(k - 1 - padding, k - 1 - padding)] * 2,
                                 lhs_dilation=(stride, stride),
                                 dimension_numbers=("NCHW", "OIHW", "NCHW"))
    return y if b is None else y + b[None, :, None, None]


def _ref_bn(x, g, b, eps=1e-5):
    mean = jnp.mean(x, axis=(0, 2, 3), keepdims=True)
    var = jnp.mean((x - mean) ** 2, axis=(0, 2, 3), keepdims=True)
    return (x - mean) * lax.rsqrt(var + eps) * g[None, :, None, None] + b[None, :, None, None]


def _lrelu(x):
    return jnp.where(x > 0.0, x, 0.2 * x)


def unet_block_ref(x, p):
    mode = p["mode"]
    if mode == "outermost":
        h = _ref_conv(x, p["down_w"], None, 2, 1)
        h = unet_block_ref(h, p["sub"])
        h = _ref_convT(jnp.maximum(h, 0.0), p["up_w"], p["up_b"], 2, 1)
        return jnp.tanh(h)
    if mode == "innermost":
        h = _ref_conv(_lrelu(x), p["down_w"], None, 2, 1)
        h = _ref_convT(jnp.maximum(h, 0.0), p["up_w"], None, 2, 1)
        h = _ref_bn(h, p["up_gamma"], p["up_beta"])
        return jnp.concatenate([x, h], axis=1)
    h = _ref_conv(_lrelu(x), p["down_w"], None, 2, 1)
    h = _ref_bn(h, p["down_gamma"], p["down_beta"])
    h = unet_block_ref(h, p["sub"])
    h = _ref_convT(jnp.maximum(h, 0.0), p["up_w"], None, 2, 1)
    h = _ref_bn(h, p["up_gamma"], p["up_beta"])
    return jnp.concatenate([x, h], axis=1)


# --------------------------------- main ------------------------------------ #

if __name__ == "__main__":
    key = jax.random.PRNGKey(0)
    kx, k0, k1, k2 = jax.random.split(key, 4)

    # 3-level nest exercising all three branches: outermost(middle(innermost)).
    inner = init_unet_block_params(k2, outer_nc=16, inner_nc=32, innermost=True)
    middle = init_unet_block_params(k1, outer_nc=8, inner_nc=16)
    middle["sub"] = inner
    outer = init_unet_block_params(k0, outer_nc=3, inner_nc=8, input_nc=4, outermost=True)
    outer["sub"] = middle

    N, C, H, W = 2, 4, 16, 16
    x = jax.random.normal(kx, (N, C, H, W), jnp.float32)

    x_nhwc = jnp.transpose(x, (0, 2, 3, 1))
    out_nhwc = unet_block_pallas(x_nhwc, outer)
    out = jax.block_until_ready(jnp.transpose(out_nhwc, (0, 3, 1, 2)))

    ref = jax.block_until_ready(unet_block_ref(x, outer))
    assert out.shape == ref.shape == (2, 3, 16, 16), (out.shape, ref.shape)
    # bf16 MXU inputs AND bf16 inter-layer activations (perf feedback) vs. the
    # all-f32 reference => moderately loose tolerance.
    np.testing.assert_allclose(np.asarray(out), np.asarray(ref), rtol=4e-2, atol=4e-2)

    print("KERNEL_OK")
</pallas_src>

<mosaic_0001>
module attributes {stable_mosaic.version = 11 : i64} {
  func.func @_matmul_small_kernel(%arg0: i32, %arg1: memref<128x64xbf16, #tpu.memory_space<vmem>>, %arg2: memref<64x128xbf16, #tpu.memory_space<vmem>>, %arg3: memref<1x128xf32, #tpu.memory_space<vmem>>, %arg4: memref<128x128xbf16, #tpu.memory_space<vmem>>) attributes {dimension_semantics = [#tpu.dimension_semantics<parallel>], iteration_bounds = array<i64: 1>, scalar_prefetch = 0 : i64, scratch_operands = 0 : i64, tpu.core_type = #tpu.core_type<tc>, window_params = [{transform_indices = @transform_0, window_bounds = array<i64: 128, 64>}, {pipeline_mode = #tpu.pipeline_mode<synchronous>, transform_indices = @transform_1, window_bounds = array<i64: 64, 128>}, {pipeline_mode = #tpu.pipeline_mode<synchronous>, transform_indices = @transform_2, window_bounds = array<i64: 1, 128>}, {transform_indices = @transform_3, window_bounds = array<i64: 128, 128>}]} {
    %c0 = arith.constant 0 : index
    %c0_0 = arith.constant 0 : index
    %0 = vector.load %arg1[%c0, %c0_0] : memref<128x64xbf16, #tpu.memory_space<vmem>>, vector<128x64xbf16>
    %c0_1 = arith.constant 0 : index
    %c0_2 = arith.constant 0 : index
    %1 = vector.load %arg2[%c0_1, %c0_2] : memref<64x128xbf16, #tpu.memory_space<vmem>>, vector<64x128xbf16>
    %cst = arith.constant dense<0.000000e+00> : vector<128x128xf32>
    %2 = tpu.matmul %0, %1, %cst {dimension_numbers = #tpu.dot_dimension_numbers<[1], [0], [0], [1], [0, 0, 1, 1], [], []>} : vector<128x64xbf16>, vector<64x128xbf16>, vector<128x128xf32> -> vector<128x128xf32>
    %c0_3 = arith.constant 0 : index
    %c0_4 = arith.constant 0 : index
    %3 = vector.load %arg3[%c0_3, %c0_4] : memref<1x128xf32, #tpu.memory_space<vmem>>, vector<1x128xf32>
    %4 = vector.broadcast %3 : vector<1x128xf32> to vector<128x128xf32>
    %5 = arith.addf %2, %4 : vector<128x128xf32>
    %6 = arith.truncf %5 : vector<128x128xf32> to vector<128x128xbf16>
    %c0_5 = arith.constant 0 : index
    %c0_6 = arith.constant 0 : index
    %7 = vector.load %arg4[%c0_5, %c0_6] : memref<128x128xbf16, #tpu.memory_space<vmem>>, vector<128x128xbf16>
    tpu.vector_store %arg4[%c0_5, %c0_6], %6 {strides = array<i32>} : memref<128x128xbf16, #tpu.memory_space<vmem>>, vector<128x128xbf16>,
    return
  }
  func.func @transform_0(%arg0: i32) -> (i32, i32) {
    %c0_i32 = arith.constant 0 : i32
    %c0_i32_0 = arith.constant 0 : i32
    return %arg0, %c0_i32 : i32, i32
  }
  func.func @transform_1(%arg0: i32) -> (i32, i32) {
    %c0_i32 = arith.constant 0 : i32
    %c0_i32_0 = arith.constant 0 : i32
    %c0_i32_1 = arith.constant 0 : i32
    return %c0_i32, %c0_i32_0 : i32, i32
  }
  func.func @transform_2(%arg0: i32) -> (i32, i32) {
    %c0_i32 = arith.constant 0 : i32
    %c0_i32_0 = arith.constant 0 : i32
    %c0_i32_1 = arith.constant 0 : i32
    return %c0_i32, %c0_i32_0 : i32, i32
  }
  func.func @transform_3(%arg0: i32) -> (i32, i32) {
    %c0_i32 = arith.constant 0 : i32
    %c0_i32_0 = arith.constant 0 : i32
    return %arg0, %c0_i32 : i32, i32
  }
}

</mosaic_0001>

<llo_original>
// kernel: tpu_custom_call.1
$region0: #{tpu_custom_call.1}
  #allocation0 [shape = 'u32[]', space=smem, size = 0x4, offset = 0x4, fixed_abs, tag = 'smem constant byte address 0x4 - core index']
  #allocation1 [shape = 'u32[144,128]{1,0:T(1,128)}', space=vmem, size = 0x12000, scoped, tag = 'internal scratch']
  %s0 = inlined_call_operand.vmem [shape: bf16[128,64], index: 0, kind: input, shape index: {}]
  %s1 = inlined_call_operand.vmem [shape: bf16[64,128], index: 1, kind: input, shape index: {}]
  %s2 = inlined_call_operand.vmem [shape: f32[1,128], index: 2, kind: input, shape index: {}]
  %s3 = inlined_call_operand.hbm [shape: bf16[128,128], index: 3, kind: output, shape index: {}]
  %s4 = sld [smem:[#allocation0]]
  $region22: #{tpu_custom_call.1} parent=0
    _
  %s6 = ssub.s32 1, %s4
  %s7 = scalar_select 0, %s6, %s4
  $region1: #{tpu_custom_call.1} parent=0
    #allocation2 [shape = 'u8[32768]{0}', space=vmem, size = 0x8000, scoped, tag = 'output window, operand 0, single buffered']
    #allocation3 [shape = 's32[1]{0}', space=sflag, size = 0x4, scoped, tag = 'scoped memory for tpu_custom_call.1']
    %8 = vsyncpa [#allocation3], 0
    // Predicated region
    $region2: #{tpu_custom_call.1} parent=1 // pred_check
      _
    $region3: #{tpu_custom_call.1} parent=1 // pred_check_branch
      %10 = sbr.rel (0) target = $region5
    $region4: #{tpu_custom_call.1} parent=1 // pred_region
      _
    $region5: #{tpu_custom_call.1} parent=1 // pred_fallthru
      _
    // Predicated region
    $region6: #{tpu_custom_call.1} parent=1 // pred_check
      _
    $region7: #{tpu_custom_call.1} parent=1 // pred_check_branch
      %12 = sbr.rel (0) target = $region9
    $region8: #{tpu_custom_call.1} parent=1 // pred_region
      _
    $region9: #{tpu_custom_call.1} parent=1 // pred_fallthru
      _
    // Predicated region
    $region10: #{tpu_custom_call.1} parent=1 // pred_check
      _
    $region11: #{tpu_custom_call.1} parent=1 // pred_check_branch
      %14 = sbr.rel (0) target = $region13
    $region12: #{tpu_custom_call.1} parent=1 // pred_region
      _
    $region13: #{tpu_custom_call.1} parent=1 // pred_fallthru
      _
    %v16 = vld [vmem:[%s0] sm:$0xf]
    %v17 = vld [vmem:[%s0 + $0x4] sm:$0xf]
    %v18 = vld [vmem:[%s0 + $0x8] sm:$0xf]
    %v19 = vld [vmem:[%s0 + $0xc] sm:$0xf]
    %v20 = vld [vmem:[%s0 + $0x10] sm:$0xf]
    %v21 = vld [vmem:[%s0 + $0x14] sm:$0xf]
    %v22 = vld [vmem:[%s0 + $0x18] sm:$0xf]
    %v23 = vld [vmem:[%s0 + $0x1c] sm:$0xf]
    %v24 = vld [vmem:[%s0 + $0x20] sm:$0xf]
    %v25 = vld [vmem:[%s0 + $0x24] sm:$0xf]
    %v26 = vld [vmem:[%s0 + $0x28] sm:$0xf]
    %v27 = vld [vmem:[%s0 + $0x2c] sm:$0xf]
    %v28 = vld [vmem:[%s0 + $0x30] sm:$0xf]
    %v29 = vld [vmem:[%s0 + $0x34] sm:$0xf]
    %v30 = vld [vmem:[%s0 + $0x38] sm:$0xf]
    %v31 = vld [vmem:[%s0 + $0x3c] sm:$0xf]
    %v32 = vld [vmem:[%s1] sm:$0xf]
    %v33 = vld [vmem:[%s1 + $0x4] sm:$0xf]
    %v34 = vld [vmem:[%s1 + $0x8] sm:$0xf]
    %v35 = vld [vmem:[%s1 + $0xc] sm:$0xf]
    %v36 = vld [vmem:[%s1 + $0x10] sm:$0xf]
    %v37 = vld [vmem:[%s1 + $0x14] sm:$0xf]
    %v38 = vld [vmem:[%s1 + $0x18] sm:$0xf]
    %v39 = vld [vmem:[%s1 + $0x1c] sm:$0xf]
    %v40 = vld [vmem:[%s2] sm:$0x1]
    %v42 = vlaneseq
    %v43 = vshrl.u32 %v42, 7
    %v44 = vsub.s32 0, %v43
    %v45 = vrot.slane %v40, %v44
    %v63 = vunpack.c.l.b16 %v16
    %v64 = vunpack.c.l.b16 %v17
    %v65 = vunpack.c.l.b16 %v18
    %v66 = vunpack.c.l.b16 %v19
    %v67 = vunpack.c.l.b16 %v20
    %v68 = vunpack.c.l.b16 %v21
    %v69 = vunpack.c.l.b16 %v22
    %v70 = vunpack.c.l.b16 %v23
    %v71 = vunpack.c.l.b16 %v24
    %v72 = vunpack.c.l.b16 %v25
    %v73 = vunpack.c.l.b16 %v26
    %v74 = vunpack.c.l.b16 %v27
    %v75 = vunpack.c.l.b16 %v28
    %v76 = vunpack.c.l.b16 %v29
    %v77 = vunpack.c.l.b16 %v30
    %v78 = vunpack.c.l.b16 %v31
    %v79 = vpack.c.b16 %v64, %v63
    %v80 = vpack.c.b16 %v66, %v65
    %v81 = vpack.c.b16 %v68, %v67
    %v82 = vpack.c.b16 %v70, %v69
    %v83 = vpack.c.b16 %v72, %v71
    %v84 = vpack.c.b16 %v74, %v73
    %v85 = vpack.c.b16 %v76, %v75
    %v86 = vpack.c.b16 %v78, %v77
    %v95 = vunpack.c.l.b16 %v32
    %v96 = vunpack.c.l.b16 %v33
    %v97 = vunpack.c.l.b16 %v34
    %v98 = vunpack.c.l.b16 %v35
    %v99 = vunpack.c.l.b16 %v36
    %v100 = vunpack.c.l.b16 %v37
    %v101 = vunpack.c.l.b16 %v38
    %v102 = vunpack.c.l.b16 %v39
    %v103 = vpack.c.b16 %v96, %v95
    %v104 = vpack.c.b16 %v98, %v97
    %v105 = vpack.c.b16 %v100, %v99
    %v106 = vpack.c.b16 %v102, %v101
    %vm111 = vcmask 523264
    %v113 = vsel %vm111, %v79, 0
    %v116 = vsel %vm111, %v80, 0
    %v119 = vsel %vm111, %v81, 0
    %v122 = vsel %vm111, %v82, 0
    %v125 = vsel %vm111, %v83, 0
    %v128 = vsel %vm111, %v84, 0
    %v131 = vsel %vm111, %v85, 0
    %v134 = vsel %vm111, %v86, 0
    %136 = vmatprep.subr.bf16.mxu0 0
    %137 = vmatpush1.bf16.msra.mxu0 0
    %138 = vmatprep.subr.bf16.mxu0 0
    %139 = vmatpush1.bf16.msra.mxu0 0
    %140 = vmatprep.subr.bf16.mxu0 0
    %141 = vmatpush1.bf16.msra.mxu0 0
    %142 = vmatprep.subr.bf16.mxu0 0
    %143 = vmatpush1.bf16.msra.mxu0 0
    %144 = vmatprep.subr.bf16.mxu0 0
    %145 = vmatpush1.bf16.msra.mxu0 %v106
    %146 = vmatprep.subr.bf16.mxu0 0
    %147 = vmatpush1.bf16.msra.mxu0 %v105
    %148 = vmatprep.subr.bf16.mxu0 0
    %149 = vmatpush1.bf16.msra.mxu0 %v104
    %150 = vmatprep.subr.bf16.mxu0 0
    %151 = vmatpush1.bf16.msra.mxu0 %v103
    %152 = vmatprep.subr.bf16.mxu0 0
    %153 = vmatpush2.bf16.msra.mxu0 0
    %154 = vmatprep.subr.bf16.mxu0 0
    %155 = vmatpush2.bf16.msra.mxu0 0
    %156 = vmatprep.subr.bf16.mxu0 0
    %157 = vmatpush2.bf16.msra.mxu0 0
    %158 = vmatprep.subr.bf16.mxu0 0
    %159 = vmatpush2.bf16.msra.mxu0 0
    %160 = vmatprep.subr.bf16.mxu0 0
    %161 = vmatpush2.bf16.msra.mxu0 0
    %162 = vmatprep.subr.bf16.mxu0 0
    %163 = vmatpush2.bf16.msra.mxu0 0
    %164 = vmatprep.subr.bf16.mxu0 0
    %165 = vmatpush2.bf16.msra.mxu0 0
    %166 = vmatprep.subr.bf16.mxu0 0
    %167 = vmatpush2.bf16.msra.mxu0 0
    %168 = vmatprep.mubr.bf16.mxu0 0
    %169 = vmatmul.mubr.bf16.gmra.mxu0 %v113
    %v170 = vpop.f32.mrf.mxu0
    %v171 = vadd.f32 %v45, %v170
    %v172 = vpop.f32.mrf.mxu0
    %v173 = vpop.f32.mrf.mxu0
    %v174 = vadd.f32 %v45, %v173
    %v175 = vpop.f32.mrf.mxu0
    %176 = vmatprep.mubr.bf16.mxu0 0
    %177 = vmatmul.mubr.bf16.gmra.mxu0 %v116
    %v178 = vpop.f32.mrf.mxu0
    %v179 = vadd.f32 %v45, %v178
    %v180 = vpop.f32.mrf.mxu0
    %v181 = vpop.f32.mrf.mxu0
    %v182 = vadd.f32 %v45, %v181
    %v183 = vpop.f32.mrf.mxu0
    %184 = vmatprep.mubr.bf16.mxu0 0
    %185 = vmatmul.mubr.bf16.gmra.mxu0 %v119
    %v186 = vpop.f32.mrf.mxu0
    %v187 = vadd.f32 %v45, %v186
    %v188 = vpop.f32.mrf.mxu0
    %v189 = vpop.f32.mrf.mxu0
    %v190 = vadd.f32 %v45, %v189
    %v191 = vpop.f32.mrf.mxu0
    %192 = vmatprep.mubr.bf16.mxu0 0
    %193 = vmatmul.mubr.bf16.gmra.mxu0 %v122
    %v194 = vpop.f32.mrf.mxu0
    %v195 = vadd.f32 %v45, %v194
    %v196 = vpop.f32.mrf.mxu0
    %v197 = vpop.f32.mrf.mxu0
    %v198 = vadd.f32 %v45, %v197
    %v199 = vpop.f32.mrf.mxu0
    %200 = vmatprep.mubr.bf16.mxu0 0
    %201 = vmatmul.mubr.bf16.gmra.mxu0 %v125
    %v202 = vpop.f32.mrf.mxu0
    %v203 = vadd.f32 %v45, %v202
    %v204 = vpop.f32.mrf.mxu0
    %v205 = vpop.f32.mrf.mxu0
    %v206 = vadd.f32 %v45, %v205
    %v207 = vpop.f32.mrf.mxu0
    %208 = vmatprep.mubr.bf16.mxu0 0
    %209 = vmatmul.mubr.bf16.gmra.mxu0 %v128
    %v210 = vpop.f32.mrf.mxu0
    %v211 = vadd.f32 %v45, %v210
    %v212 = vpop.f32.mrf.mxu0
    %v213 = vpop.f32.mrf.mxu0
    %v214 = vadd.f32 %v45, %v213
    %v215 = vpop.f32.mrf.mxu0
    %216 = vmatprep.mubr.bf16.mxu0 0
    %217 = vmatmul.mubr.bf16.gmra.mxu0 %v131
    %v218 = vpop.f32.mrf.mxu0
    %v219 = vadd.f32 %v45, %v218
    %v220 = vpop.f32.mrf.mxu0
    %v221 = vpop.f32.mrf.mxu0
    %v222 = vadd.f32 %v45, %v221
    %v223 = vpop.f32.mrf.mxu0
    %224 = vmatprep.mubr.bf16.mxu0 0
    %225 = vmatmul.mubr.bf16.gmra.mxu0 %v134
    %v226 = vpop.f32.mrf.mxu0
    %v227 = vadd.f32 %v45, %v226
    %v228 = vpop.f32.mrf.mxu0
    %v229 = vpop.f32.mrf.mxu0
    %v230 = vadd.f32 %v45, %v229
    %v231 = vpop.f32.mrf.mxu0
    %232 = vdwg.mxu0
    %v233 = vpack.c.bf16 %v174, %v171
    %v234 = vpack.c.bf16 %v182, %v179
    %v235 = vpack.c.bf16 %v190, %v187
    %v236 = vpack.c.bf16 %v198, %v195
    %v237 = vpack.c.bf16 %v206, %v203
    %v238 = vpack.c.bf16 %v214, %v211
    %v239 = vpack.c.bf16 %v222, %v219
    %v240 = vpack.c.bf16 %v230, %v227
    %v249 = vunpack.c.l.b16 %v233
    %v250 = vunpack.c.h.b16 %v233
    %v251 = vunpack.c.l.b16 %v234
    %v252 = vunpack.c.h.b16 %v234
    %v253 = vunpack.c.l.b16 %v235
    %v254 = vunpack.c.h.b16 %v235
    %v255 = vunpack.c.l.b16 %v236
    %v256 = vunpack.c.h.b16 %v236
    %v257 = vunpack.c.l.b16 %v237
    %v258 = vunpack.c.h.b16 %v237
    %v259 = vunpack.c.l.b16 %v238
    %v260 = vunpack.c.h.b16 %v238
    %v261 = vunpack.c.l.b16 %v239
    %v262 = vunpack.c.h.b16 %v239
    %v263 = vunpack.c.l.b16 %v240
    %v264 = vunpack.c.h.b16 %v240
    %v265 = vpack.c.b16 %v249, %v249
    %v266 = vpack.c.b16 %v250, %v250
    %v267 = vpack.c.b16 %v251, %v251
    %v268 = vpack.c.b16 %v252, %v252
    %v269 = vpack.c.b16 %v253, %v253
    %v270 = vpack.c.b16 %v254, %v254
    %v271 = vpack.c.b16 %v255, %v255
    %v272 = vpack.c.b16 %v256, %v256
    %v273 = vpack.c.b16 %v257, %v257
    %v274 = vpack.c.b16 %v258, %v258
    %v275 = vpack.c.b16 %v259, %v259
    %v276 = vpack.c.b16 %v260, %v260
    %v277 = vpack.c.b16 %v261, %v261
    %v278 = vpack.c.b16 %v262, %v262
    %v279 = vpack.c.b16 %v263, %v263
    %v280 = vpack.c.b16 %v264, %v264
    %297 = vst [vmem:[#allocation2] sm:$0xf] %v265
    %298 = vst [vmem:[#allocation2 + $0x4] sm:$0xf] %v266
    %299 = vst [vmem:[#allocation2 + $0x8] sm:$0xf] %v267
    %300 = vst [vmem:[#allocation2 + $0xc] sm:$0xf] %v268
    %301 = vst [vmem:[#allocation2 + $0x10] sm:$0xf] %v269
    %302 = vst [vmem:[#allocation2 + $0x14] sm:$0xf] %v270
    %303 = vst [vmem:[#allocation2 + $0x18] sm:$0xf] %v271
    %304 = vst [vmem:[#allocation2 + $0x1c] sm:$0xf] %v272
    %305 = vst [vmem:[#allocation2 + $0x20] sm:$0xf] %v273
    %306 = vst [vmem:[#allocation2 + $0x24] sm:$0xf] %v274
    %307 = vst [vmem:[#allocation2 + $0x28] sm:$0xf] %v275
    %308 = vst [vmem:[#allocation2 + $0x2c] sm:$0xf] %v276
    %309 = vst [vmem:[#allocation2 + $0x30] sm:$0xf] %v277
    %310 = vst [vmem:[#allocation2 + $0x34] sm:$0xf] %v278
    %311 = vst [vmem:[#allocation2 + $0x38] sm:$0xf] %v279
    %312 = vst [vmem:[#allocation2 + $0x3c] sm:$0xf] %v280
    // Predicated region
    $region14: #{tpu_custom_call.1} parent=1 // pred_check
      _
    $region15: #{tpu_custom_call.1} parent=1 // pred_check_branch
      %314 = sbr.rel (0) target = $region17
    $region16: #{tpu_custom_call.1} parent=1 // pred_region
      %s316 = ssub.s32 1024, 1024
      %317 = vsyncadd [#allocation3], %s316
      %s318 = sshll.u32 [#allocation2], 4
      %s319 = int_to_ptr.vmem [resolvable:$true] %s318
      %324 = dma.vmem_to_hbm [thread:$0]  %s319, 1024, %s3, [#allocation3], 64, 64, 4
    $region17: #{tpu_custom_call.1} parent=1 // pred_fallthru
      _
    // Predicated region
    $region18: #{tpu_custom_call.1} parent=1 // pred_check
      _
    $region19: #{tpu_custom_call.1} parent=1 // pred_check_branch
      %326 = sbr.rel (0) target = $region21
    $region20: #{tpu_custom_call.1} parent=1 // pred_region
      %327 = dma.done [#allocation3], 1024
    $region21: #{tpu_custom_call.1} parent=1 // pred_fallthru
      _
    %328 = vsyncpa [#allocation3], 1

</llo_original>
